<compile_context>
chip_gen: v7x
topology: tpu7x:2x2x1
jax: 0.10.0
libtpu: 0.0.40
codegen_flags: <defaults>
</compile_context>

<pallas_src>
import jax
import jax.numpy as jnp
from jax.experimental import pallas as pl
from jax.experimental.pallas import tpu as pltpu

# Logical vs padded ("physical") hidden widths — padded to lane multiples of 128.
_H1_LOGICAL, _H2_LOGICAL = 400, 300
_H1, _H2 = 512, 384


def _round_up(n: int, m: int) -> int:
    return ((n + m - 1) // m) * m


def _actor_kernel(ma_ref, x_ref, w1_ref, b1_ref, w2_ref, b2_ref, w3_ref, b3_ref, o_ref):
    """One batch tile: three MXU matmuls (bf16 inputs, f32 accumulate), f32 elementwise."""
    max_action = ma_ref[0]

    # Layer 1: Linear(state_dim, 400->512) + ReLU
    h1 = jnp.dot(x_ref[...].astype(jnp.bfloat16), w1_ref[...],
                 preferred_element_type=jnp.float32)
    h1 = jnp.maximum(h1 + b1_ref[...], 0.0)

    # Layer 2: Linear(400->512, 300->384) + ReLU
    h2 = jnp.dot(h1.astype(jnp.bfloat16), w2_ref[...],
                 preferred_element_type=jnp.float32)
    h2 = jnp.maximum(h2 + b2_ref[...], 0.0)

    # Layer 3: Linear(300->384, action_dim->128), then max_action * tanh
    h3 = jnp.dot(h2.astype(jnp.bfloat16), w3_ref[...],
                 preferred_element_type=jnp.float32)
    o_ref[...] = (max_action * jnp.tanh(h3 + b3_ref[...])).astype(o_ref.dtype)


def init_actor_params(key, state_dim, action_dim):
    """torch.nn.Linear-style init (U[-1/sqrt(fan_in), 1/sqrt(fan_in)]), logical f32 shapes."""
    def linear_init(k, fan_in, fan_out):
        kw, kb = jax.random.split(k)
        bound = 1.0 / jnp.sqrt(jnp.float32(fan_in))
        w = jax.random.uniform(kw, (fan_in, fan_out), jnp.float32, -bound, bound)
        b = jax.random.uniform(kb, (1, fan_out), jnp.float32, -bound, bound)
        return w, b

    k1, k2, k3 = jax.random.split(key, 3)
    w1, b1 = linear_init(k1, state_dim, _H1_LOGICAL)
    w2, b2 = linear_init(k2, _H1_LOGICAL, _H2_LOGICAL)
    w3, b3 = linear_init(k3, _H2_LOGICAL, action_dim)
    return {"w1": w1, "b1": b1, "w2": w2, "b2": b2, "w3": w3, "b3": b3}


def prepare_actor_params(params):
    """One-time prep: zero-pad hidden/output widths to lane multiples, cast weights to bf16.

    Zero-padded columns/rows contribute exactly 0 through ReLU and the next matmul, so
    the padded network is numerically identical to the logical one on the logical slice.
    """
    def pad2(a, rows, cols, dtype):
        r, c = a.shape
        return jnp.pad(a, ((0, rows - r), (0, cols - c))).astype(dtype)

    state_dim = params["w1"].shape[0]
    action_dim = params["w3"].shape[1]
    a_pad = _round_up(action_dim, 128)
    return {
        "w1": pad2(params["w1"], state_dim, _H1, jnp.bfloat16),
        "b1": pad2(params["b1"], 1, _H1, jnp.float32),
        "w2": pad2(params["w2"], _H1, _H2, jnp.bfloat16),
        "b2": pad2(params["b2"], 1, _H2, jnp.float32),
        "w3": pad2(params["w3"], _H2, a_pad, jnp.bfloat16),
        "b3": pad2(params["b3"], 1, a_pad, jnp.float32),
        "action_dim": action_dim,
    }


def actor_forward(x, prepared, max_action, *, block_batch=512):
    """x: [B, state_dim] f32. prepared: output of prepare_actor_params.

    Returns [B, action_dim] f32. max_action may be a Python float or a traced scalar
    (passed to the kernel through SMEM, so its value never triggers a recompile).
    """
    w1, b1 = prepared["w1"], prepared["b1"]
    w2, b2 = prepared["w2"], prepared["b2"]
    w3, b3 = prepared["w3"], prepared["b3"]
    action_dim = prepared["action_dim"]

    B, state_dim = x.shape
    a_pad = w3.shape[1]

    # Batch tile: multiple of 8 sublanes, capped at block_batch; pad batch to a multiple.
    tb = min(block_batch, _round_up(B, 8))
    b_pad = _round_up(B, tb)
    if b_pad != B:
        x = jnp.pad(x, ((0, b_pad - B), (0, 0)))
    nb = b_pad // tb

    ma = jnp.full((1,), max_action, jnp.float32)

    out = pl.pallas_call(
        _actor_kernel,
        out_shape=jax.ShapeDtypeStruct((b_pad, a_pad), jnp.float32),
        grid=(nb,),
        in_specs=[
            pl.BlockSpec(memory_space=pltpu.MemorySpace.SMEM),   # max_action scalar
            pl.BlockSpec((tb, state_dim), lambda i: (i, 0)),     # x: tiled over batch
            pl.BlockSpec(w1.shape, lambda i: (0, 0)),            # weights/biases:
            pl.BlockSpec(b1.shape, lambda i: (0, 0)),            #   VMEM-resident across
            pl.BlockSpec(w2.shape, lambda i: (0, 0)),            #   all batch tiles
            pl.BlockSpec(b2.shape, lambda i: (0, 0)),
            pl.BlockSpec(w3.shape, lambda i: (0, 0)),
            pl.BlockSpec(b3.shape, lambda i: (0, 0)),
        ],
        out_specs=pl.BlockSpec((tb, a_pad), lambda i: (i, 0)),
        compiler_params=pltpu.CompilerParams(
            dimension_semantics=("parallel",),       # v7x: shard batch tiles over 2 TCs
            vmem_limit_bytes=64 * 1024 * 1024,       # portable headroom (v7x 64 MiB VMEM)
        ),
    )(ma, x, w1, b1, w2, b2, w3, b3)

    return out[:B, :action_dim]


def actor_forward_ref_f32(x, params, max_action):
    """Pure-f32 reference (PyTorch-equivalent math)."""
    h = jnp.maximum(x @ params["w1"] + params["b1"], 0.0)
    h = jnp.maximum(h @ params["w2"] + params["b2"], 0.0)
    return max_action * jnp.tanh(h @ params["w3"] + params["b3"])


def actor_forward_ref_bf16(x, params, max_action):
    """Reference matching the kernel numerics: bf16 matmul inputs, f32 accumulate."""
    def lin(h, w, b):
        hb = h.astype(jnp.bfloat16).astype(jnp.float32)
        wb = w.astype(jnp.bfloat16).astype(jnp.float32)
        return jnp.dot(hb, wb, precision=jax.lax.Precision.HIGHEST) + b

    h = jnp.maximum(lin(x, params["w1"], params["b1"]), 0.0)
    h = jnp.maximum(lin(h, params["w2"], params["b2"]), 0.0)
    return max_action * jnp.tanh(lin(h, params["w3"], params["b3"]))


if __name__ == "__main__":
    key = jax.random.PRNGKey(0)
    k_param, k_x = jax.random.split(key)

    batch = 2
    state_dim = 16
    action_dim = 4
    max_action = 2.0

    params = init_actor_params(k_param, state_dim, action_dim)
    prepared = prepare_actor_params(params)
    x = jax.random.normal(k_x, (batch, state_dim), jnp.float32)

    out = actor_forward(x, prepared, max_action)
    out = jax.block_until_ready(out)
    assert out.shape == (batch, action_dim)

    # Tight check vs a reference with the same bf16-input / f32-accumulate matmul numerics.
    ref_bf16 = actor_forward_ref_bf16(x, params, max_action)
    assert jnp.allclose(out, ref_bf16, atol=1e-3, rtol=1e-3), "mismatch vs bf16 reference"

    # Loose sanity check vs the pure-f32 PyTorch-equivalent math (bf16 weight rounding only).
    ref_f32 = actor_forward_ref_f32(x, params, max_action)
    assert jnp.allclose(out, ref_f32, atol=1e-1, rtol=1e-1), "mismatch vs f32 reference"

    print("KERNEL_OK")
</pallas_src>

<mosaic_0001>
module attributes {stable_mosaic.version = 11 : i64} {
  func.func @_actor_kernel(%arg0: i32, %arg1: memref<1xf32, #tpu.memory_space<smem>>, %arg2: memref<8x16xf32, #tpu.memory_space<vmem>>, %arg3: memref<16x512xbf16, #tpu.memory_space<vmem>>, %arg4: memref<1x512xf32, #tpu.memory_space<vmem>>, %arg5: memref<512x384xbf16, #tpu.memory_space<vmem>>, %arg6: memref<1x384xf32, #tpu.memory_space<vmem>>, %arg7: memref<384x128xbf16, #tpu.memory_space<vmem>>, %arg8: memref<1x128xf32, #tpu.memory_space<vmem>>, %arg9: memref<8x128xf32, #tpu.memory_space<vmem>>) attributes {dimension_semantics = [#tpu.dimension_semantics<parallel>], iteration_bounds = array<i64: 1>, scalar_prefetch = 0 : i64, scratch_operands = 0 : i64, tpu.core_type = #tpu.core_type<tc>, window_params = [{transform_indices = @transform_0, window_bounds = array<i64: 1>}, {transform_indices = @transform_1, window_bounds = array<i64: 8, 16>}, {pipeline_mode = #tpu.pipeline_mode<synchronous>, transform_indices = @transform_2, window_bounds = array<i64: 16, 512>}, {pipeline_mode = #tpu.pipeline_mode<synchronous>, transform_indices = @transform_3, window_bounds = array<i64: 1, 512>}, {pipeline_mode = #tpu.pipeline_mode<synchronous>, transform_indices = @transform_4, window_bounds = array<i64: 512, 384>}, {pipeline_mode = #tpu.pipeline_mode<synchronous>, transform_indices = @transform_5, window_bounds = array<i64: 1, 384>}, {pipeline_mode = #tpu.pipeline_mode<synchronous>, transform_indices = @transform_6, window_bounds = array<i64: 384, 128>}, {pipeline_mode = #tpu.pipeline_mode<synchronous>, transform_indices = @transform_7, window_bounds = array<i64: 1, 128>}, {transform_indices = @transform_8, window_bounds = array<i64: 8, 128>}]} {
    %c0 = arith.constant 0 : index
    %0 = memref.load %arg1[%c0] : memref<1xf32, #tpu.memory_space<smem>>
    %c0_0 = arith.constant 0 : index
    %c0_1 = arith.constant 0 : index
    %1 = vector.load %arg2[%c0_0, %c0_1] : memref<8x16xf32, #tpu.memory_space<vmem>>, vector<8x16xf32>
    %2 = arith.truncf %1 : vector<8x16xf32> to vector<8x16xbf16>
    %c0_2 = arith.constant 0 : index
    %c0_3 = arith.constant 0 : index
    %3 = vector.load %arg3[%c0_2, %c0_3] : memref<16x512xbf16, #tpu.memory_space<vmem>>, vector<16x512xbf16>
    %cst = arith.constant dense<0.000000e+00> : vector<8x512xf32>
    %4 = tpu.matmul %2, %3, %cst {dimension_numbers = #tpu.dot_dimension_numbers<[1], [0], [0], [1], [0, 0, 1, 1], [], []>} : vector<8x16xbf16>, vector<16x512xbf16>, vector<8x512xf32> -> vector<8x512xf32>
    %c0_4 = arith.constant 0 : index
    %c0_5 = arith.constant 0 : index
    %5 = vector.load %arg4[%c0_4, %c0_5] : memref<1x512xf32, #tpu.memory_space<vmem>>, vector<1x512xf32>
    %6 = vector.broadcast %5 : vector<1x512xf32> to vector<8x512xf32>
    %7 = arith.addf %4, %6 : vector<8x512xf32>
    %cst_6 = arith.constant 0.000000e+00 : f32
    %8 = vector.broadcast %cst_6 : f32 to vector<8x512xf32>
    %9 = arith.maximumf %7, %8 : vector<8x512xf32>
    %10 = arith.truncf %9 : vector<8x512xf32> to vector<8x512xbf16>
    %c0_7 = arith.constant 0 : index
    %c0_8 = arith.constant 0 : index
    %11 = vector.load %arg5[%c0_7, %c0_8] : memref<512x384xbf16, #tpu.memory_space<vmem>>, vector<512x384xbf16>
    %cst_9 = arith.constant dense<0.000000e+00> : vector<8x384xf32>
    %12 = tpu.matmul %10, %11, %cst_9 {dimension_numbers = #tpu.dot_dimension_numbers<[1], [0], [0], [1], [0, 0, 1, 1], [], []>} : vector<8x512xbf16>, vector<512x384xbf16>, vector<8x384xf32> -> vector<8x384xf32>
    %c0_10 = arith.constant 0 : index
    %c0_11 = arith.constant 0 : index
    %13 = vector.load %arg6[%c0_10, %c0_11] : memref<1x384xf32, #tpu.memory_space<vmem>>, vector<1x384xf32>
    %14 = vector.broadcast %13 : vector<1x384xf32> to vector<8x384xf32>
    %15 = arith.addf %12, %14 : vector<8x384xf32>
    %cst_12 = arith.constant 0.000000e+00 : f32
    %16 = vector.broadcast %cst_12 : f32 to vector<8x384xf32>
    %17 = arith.maximumf %15, %16 : vector<8x384xf32>
    %18 = arith.truncf %17 : vector<8x384xf32> to vector<8x384xbf16>
    %c0_13 = arith.constant 0 : index
    %c0_14 = arith.constant 0 : index
    %19 = vector.load %arg7[%c0_13, %c0_14] : memref<384x128xbf16, #tpu.memory_space<vmem>>, vector<384x128xbf16>
    %cst_15 = arith.constant dense<0.000000e+00> : vector<8x128xf32>
    %20 = tpu.matmul %18, %19, %cst_15 {dimension_numbers = #tpu.dot_dimension_numbers<[1], [0], [0], [1], [0, 0, 1, 1], [], []>} : vector<8x384xbf16>, vector<384x128xbf16>, vector<8x128xf32> -> vector<8x128xf32>
    %c0_16 = arith.constant 0 : index
    %c0_17 = arith.constant 0 : index
    %21 = vector.load %arg8[%c0_16, %c0_17] : memref<1x128xf32, #tpu.memory_space<vmem>>, vector<1x128xf32>
    %22 = vector.broadcast %21 : vector<1x128xf32> to vector<8x128xf32>
    %23 = arith.addf %20, %22 : vector<8x128xf32>
    %24 = math.tanh %23 : vector<8x128xf32>
    %25 = vector.broadcast %0 : f32 to vector<8x128xf32>
    %26 = arith.mulf %25, %24 : vector<8x128xf32>
    %c0_18 = arith.constant 0 : index
    %c0_19 = arith.constant 0 : index
    %27 = vector.load %arg9[%c0_18, %c0_19] : memref<8x128xf32, #tpu.memory_space<vmem>>, vector<8x128xf32>
    tpu.vector_store %arg9[%c0_18, %c0_19], %26 {strides = array<i32>} : memref<8x128xf32, #tpu.memory_space<vmem>>, vector<8x128xf32>,
    return
  }
  func.func @transform_0(%arg0: i32) -> i32 {
    %c0_i32 = arith.constant 0 : i32
    %c0_i32_0 = arith.constant 0 : i32
    return %c0_i32 : i32
  }
  func.func @transform_1(%arg0: i32) -> (i32, i32) {
    %c0_i32 = arith.constant 0 : i32
    %c0_i32_0 = arith.constant 0 : i32
    return %arg0, %c0_i32 : i32, i32
  }
  func.func @transform_2(%arg0: i32) -> (i32, i32) {
    %c0_i32 = arith.constant 0 : i32
    %c0_i32_0 = arith.constant 0 : i32
    %c0_i32_1 = arith.constant 0 : i32
    return %c0_i32, %c0_i32_0 : i32, i32
  }
  func.func @transform_3(%arg0: i32) -> (i32, i32) {
    %c0_i32 = arith.constant 0 : i32
    %c0_i32_0 = arith.constant 0 : i32
    %c0_i32_1 = arith.constant 0 : i32
    return %c0_i32, %c0_i32_0 : i32, i32
  }
  func.func @transform_4(%arg0: i32) -> (i32, i32) {
    %c0_i32 = arith.constant 0 : i32
    %c0_i32_0 = arith.constant 0 : i32
    %c0_i32_1 = arith.constant 0 : i32
    return %c0_i32, %c0_i32_0 : i32, i32
  }
  func.func @transform_5(%arg0: i32) -> (i32, i32) {
    %c0_i32 = arith.constant 0 : i32
    %c0_i32_0 = arith.constant 0 : i32
    %c0_i32_1 = arith.constant 0 : i32
    return %c0_i32, %c0_i32_0 : i32, i32
  }
  func.func @transform_6(%arg0: i32) -> (i32, i32) {
    %c0_i32 = arith.constant 0 : i32
    %c0_i32_0 = arith.constant 0 : i32
    %c0_i32_1 = arith.constant 0 : i32
    return %c0_i32, %c0_i32_0 : i32, i32
  }
  func.func @transform_7(%arg0: i32) -> (i32, i32) {
    %c0_i32 = arith.constant 0 : i32
    %c0_i32_0 = arith.constant 0 : i32
    %c0_i32_1 = arith.constant 0 : i32
    return %c0_i32, %c0_i32_0 : i32, i32
  }
  func.func @transform_8(%arg0: i32) -> (i32, i32) {
    %c0_i32 = arith.constant 0 : i32
    %c0_i32_0 = arith.constant 0 : i32
    return %arg0, %c0_i32 : i32, i32
  }
}

</mosaic_0001>

<llo_original>
// kernel: tpu_custom_call.1
$region0: #{tpu_custom_call.1}
  #allocation0 [shape = 'u32[]', space=smem, size = 0x4, offset = 0x4, fixed_abs, tag = 'smem constant byte address 0x4 - core index']
  #allocation1 [shape = 'u32[144,128]{1,0:T(1,128)}', space=vmem, size = 0x12000, scoped, tag = 'internal scratch']
  #allocation2 [shape = 'f32[1]{0:T(128)S(6)}', space=smem, size = 0x200, scoped, tag = 'scoped memory for tpu_custom_call.1']
  %s0 = inlined_call_operand.<no memory space> [shape: f32[1], index: 0, kind: input, shape index: {}]
  %s1 = inlined_call_operand.hbm [shape: f32[8,16], index: 1, kind: input, shape index: {}]
  %s2 = inlined_call_operand.hbm [shape: bf16[16,512], index: 2, kind: input, shape index: {}]
  %s3 = inlined_call_operand.hbm [shape: f32[1,512], index: 3, kind: input, shape index: {}]
  %s4 = inlined_call_operand.hbm [shape: bf16[512,384], index: 4, kind: input, shape index: {}]
  %s5 = inlined_call_operand.hbm [shape: f32[1,384], index: 5, kind: input, shape index: {}]
  %s6 = inlined_call_operand.hbm [shape: bf16[384,128], index: 6, kind: input, shape index: {}]
  %s7 = inlined_call_operand.hbm [shape: f32[1,128], index: 7, kind: input, shape index: {}]
  %s8 = inlined_call_operand.hbm [shape: f32[8,128], index: 8, kind: output, shape index: {}]
  %s9 = sld [smem:[#allocation0]]
  $region70: #{tpu_custom_call.1} parent=0
    _
  %s11 = ssub.s32 1, %s9
  %s12 = scalar_select 0, %s11, %s9
  %13 = sst [smem:[#allocation2]] %s0
  $region1: #{tpu_custom_call.1} parent=0
    #allocation3 [shape = 'u8[4096]{0}', space=vmem, size = 0x1000, scoped, tag = 'input window, operand 1, single buffered']
    #allocation4 [shape = 's32[1]{0}', space=sflag, size = 0x4, scoped, tag = 'scoped memory for tpu_custom_call.1']
    #allocation5 [shape = 's32[1]{0}', space=sflag, size = 0x4, scoped, tag = 'scoped memory for tpu_custom_call.1']
    #allocation6 [shape = 'u8[16384]{0}', space=vmem, size = 0x4000, scoped, tag = 'input window, operand 2, single buffered']
    #allocation7 [shape = 's32[1]{0}', space=sflag, size = 0x4, scoped, tag = 'scoped memory for tpu_custom_call.1']
    #allocation8 [shape = 'u8[2048]{0}', space=vmem, size = 0x800, scoped, tag = 'input window, operand 3, single buffered']
    #allocation9 [shape = 'u8[393216]{0}', space=vmem, size = 0x60000, scoped, tag = 'input window, operand 4, single buffered']
    #allocation10 [shape = 's32[1]{0}', space=sflag, size = 0x4, scoped, tag = 'scoped memory for tpu_custom_call.1']
    #allocation11 [shape = 'u8[1536]{0}', space=vmem, size = 0x800, scoped, tag = 'input window, operand 5, single buffered']
    #allocation12 [shape = 'u8[98304]{0}', space=vmem, size = 0x18000, scoped, tag = 'input window, operand 6, single buffered']
    #allocation13 [shape = 's32[1]{0}', space=sflag, size = 0x4, scoped, tag = 'scoped memory for tpu_custom_call.1']
    #allocation14 [shape = 'u8[512]{0}', space=vmem, size = 0x400, scoped, tag = 'input window, operand 7, single buffered']
    #allocation15 [shape = 'u8[4096]{0}', space=vmem, size = 0x1000, scoped, tag = 'output window, operand 0, single buffered']
    %14 = vsyncpa [#allocation4], 0
    %15 = vsyncpa [#allocation7], 0
    %16 = vsyncpa [#allocation10], 0
    %17 = vsyncpa [#allocation13], 0
    %18 = vsyncpa [#allocation5], 0
    // Predicated region
    $region2: #{tpu_custom_call.1} parent=1 // pred_check
      _
    $region3: #{tpu_custom_call.1} parent=1 // pred_check_branch
      %20 = sbr.rel (0) target = $region5
    $region4: #{tpu_custom_call.1} parent=1 // pred_region
      _
    $region5: #{tpu_custom_call.1} parent=1 // pred_fallthru
      _
    // Predicated region
    $region6: #{tpu_custom_call.1} parent=1 // pred_check
      _
    $region7: #{tpu_custom_call.1} parent=1 // pred_check_branch
      %22 = sbr.rel (0) target = $region9
    $region8: #{tpu_custom_call.1} parent=1 // pred_region
      %s24 = ssub.s32 128, 128
      %25 = vsyncadd [#allocation4], %s24
      %s27 = sshll.u32 [#allocation3], 4
      %s28 = int_to_ptr.vmem [resolvable:$true] %s27
      %30 = dma.hbm_to_vmem [thread:$0]  %s1, 128, %s28, [#allocation4]
    $region9: #{tpu_custom_call.1} parent=1 // pred_fallthru
      _
    // Predicated region
    $region10: #{tpu_custom_call.1} parent=1 // pred_check
      _
    $region11: #{tpu_custom_call.1} parent=1 // pred_check_branch
      %32 = sbr.rel (0) target = $region13
    $region12: #{tpu_custom_call.1} parent=1 // pred_region
      %s34 = ssub.s32 512, 512
      %35 = vsyncadd [#allocation7], %s34
      %s36 = sshll.u32 [#allocation6], 4
      %s37 = int_to_ptr.vmem [resolvable:$true] %s36
      %42 = dma.hbm_to_vmem [thread:$0]  %s2, 512, %s37, [#allocation7], 256, 256, 16
    $region13: #{tpu_custom_call.1} parent=1 // pred_fallthru
      _
    // Predicated region
    $region14: #{tpu_custom_call.1} parent=1 // pred_check
      _
    $region15: #{tpu_custom_call.1} parent=1 // pred_check_branch
      %44 = sbr.rel (0) target = $region17
    $region16: #{tpu_custom_call.1} parent=1 // pred_region
      %s46 = ssub.s32 64, 64
      %47 = vsyncadd [#allocation7], %s46
      %s49 = sshll.u32 [#allocation8], 4
      %s50 = int_to_ptr.vmem [resolvable:$true] %s49
      %52 = dma.hbm_to_vmem [thread:$0]  %s3, 64, %s50, [#allocation7]
    $region17: #{tpu_custom_call.1} parent=1 // pred_fallthru
      _
    // Predicated region
    $region18: #{tpu_custom_call.1} parent=1 // pred_check
      _
    $region19: #{tpu_custom_call.1} parent=1 // pred_check_branch
      %54 = sbr.rel (0) target = $region21
    $region20: #{tpu_custom_call.1} parent=1 // pred_region
      %s56 = ssub.s32 12288, 12288
      %57 = vsyncadd [#allocation10], %s56
      %s58 = sshll.u32 [#allocation9], 4
      %s59 = int_to_ptr.vmem [resolvable:$true] %s58
      %64 = dma.hbm_to_vmem [thread:$0]  %s4, 12288, %s59, [#allocation10], 192, 192, 12
    $region21: #{tpu_custom_call.1} parent=1 // pred_fallthru
      _
    // Predicated region
    $region22: #{tpu_custom_call.1} parent=1 // pred_check
      _
    $region23: #{tpu_custom_call.1} parent=1 // pred_check_branch
      %66 = sbr.rel (0) target = $region25
    $region24: #{tpu_custom_call.1} parent=1 // pred_region
      %s68 = ssub.s32 48, 48
      %69 = vsyncadd [#allocation10], %s68
      %s71 = sshll.u32 [#allocation11], 4
      %s72 = int_to_ptr.vmem [resolvable:$true] %s71
      %74 = dma.hbm_to_vmem [thread:$0]  %s5, 48, %s72, [#allocation10]
    $region25: #{tpu_custom_call.1} parent=1 // pred_fallthru
      _
    // Predicated region
    $region26: #{tpu_custom_call.1} parent=1 // pred_check
      _
    $region27: #{tpu_custom_call.1} parent=1 // pred_check_branch
      %76 = sbr.rel (0) target = $region29
    $region28: #{tpu_custom_call.1} parent=1 // pred_region
      %s78 = ssub.s32 3072, 3072
      %79 = vsyncadd [#allocation13], %s78
      %s80 = sshll.u32 [#allocation12], 4
      %s81 = int_to_ptr.vmem [resolvable:$true] %s80
      %86 = dma.hbm_to_vmem [thread:$0]  %s6, 3072, %s81, [#allocation13], 64, 64, 4
    $region29: #{tpu_custom_call.1} parent=1 // pred_fallthru
      _
    // Predicated region
    $region30: #{tpu_custom_call.1} parent=1 // pred_check
      _
    $region31: #{tpu_custom_call.1} parent=1 // pred_check_branch
      %88 = sbr.rel (0) target = $region33
    $region32: #{tpu_custom_call.1} parent=1 // pred_region
      %s90 = ssub.s32 16, 16
      %91 = vsyncadd [#allocation13], %s90
      %s93 = sshll.u32 [#allocation14], 4
      %s94 = int_to_ptr.vmem [resolvable:$true] %s93
      %96 = dma.hbm_to_vmem [thread:$0]  %s7, 16, %s94, [#allocation13]
    $region33: #{tpu_custom_call.1} parent=1 // pred_fallthru
      _
    // Predicated region
    $region34: #{tpu_custom_call.1} parent=1 // pred_check
      _
    $region35: #{tpu_custom_call.1} parent=1 // pred_check_branch
      %98 = sbr.rel (0) target = $region37
    $region36: #{tpu_custom_call.1} parent=1 // pred_region
      %99 = dma.done [#allocation4], 128
    $region37: #{tpu_custom_call.1} parent=1 // pred_fallthru
      _
    // Predicated region
    $region38: #{tpu_custom_call.1} parent=1 // pred_check
      _
    $region39: #{tpu_custom_call.1} parent=1 // pred_check_branch
      %101 = sbr.rel (0) target = $region41
    $region40: #{tpu_custom_call.1} parent=1 // pred_region
      %102 = dma.done [#allocation7], 512
    $region41: #{tpu_custom_call.1} parent=1 // pred_fallthru
      _
    // Predicated region
    $region42: #{tpu_custom_call.1} parent=1 // pred_check
      _
    $region43: #{tpu_custom_call.1} parent=1 // pred_check_branch
      %104 = sbr.rel (0) target = $region45
    $region44: #{tpu_custom_call.1} parent=1 // pred_region
      %105 = dma.done [#allocation7], 64
    $region45: #{tpu_custom_call.1} parent=1 // pred_fallthru
      _
    // Predicated region
    $region46: #{tpu_custom_call.1} parent=1 // pred_check
      _
    $region47: #{tpu_custom_call.1} parent=1 // pred_check_branch
      %107 = sbr.rel (0) target = $region49
    $region48: #{tpu_custom_call.1} parent=1 // pred_region
      %108 = dma.done [#allocation10], 12288
    $region49: #{tpu_custom_call.1} parent=1 // pred_fallthru
      _
    // Predicated region
    $region50: #{tpu_custom_call.1} parent=1 // pred_check
      _
    $region51: #{tpu_custom_call.1} parent=1 // pred_check_branch
      %110 = sbr.rel (0) target = $region53
    $region52: #{tpu_custom_call.1} parent=1 // pred_region
      %111 = dma.done [#allocation10], 48
    $region53: #{tpu_custom_call.1} parent=1 // pred_fallthru
      _
    // Predicated region
    $region54: #{tpu_custom_call.1} parent=1 // pred_check
      _
    $region55: #{tpu_custom_call.1} parent=1 // pred_check_branch
      %113 = sbr.rel (0) target = $region57
    $region56: #{tpu_custom_call.1} parent=1 // pred_region
      %114 = dma.done [#allocation13], 3072
    $region57: #{tpu_custom_call.1} parent=1 // pred_fallthru
      _
    // Predicated region
    $region58: #{tpu_custom_call.1} parent=1 // pred_check
      _
    $region59: #{tpu_custom_call.1} parent=1 // pred_check_branch
      %116 = sbr.rel (0) target = $region61
    $region60: #{tpu_custom_call.1} parent=1 // pred_region
      %117 = dma.done [#allocation13], 16
    $region61: #{tpu_custom_call.1} parent=1 // pred_fallthru
      _
    %s119 = sld [smem:[#allocation2]]
    %v120 = vld [vmem:[#allocation3] sm:$0xff]
    %v121 = vpack.c.bf16 %v120, %v120
    %v122 = vld [vmem:[#allocation6] sm:$0xff]
    %v123 = vld [vmem:[#allocation6 + $0x8] sm:$0xff]
    %v124 = vld [vmem:[#allocation6 + $0x10] sm:$0xff]
    %v125 = vld [vmem:[#allocation6 + $0x18] sm:$0xff]
    %v126 = vld [vmem:[#allocation8] sm:$0xf]
    %v128 = vlaneseq
    %v129 = vshrl.u32 %v128, 7
    %v130 = vsub.s32 0, %v129
    %v131 = vrot.slane %v126, %v130
    %v132 = vlaneseq
    %v133 = vshrl.u32 %v132, 7
    %v134 = vsub.s32 1, %v133
    %v135 = vrot.slane %v126, %v134
    %v136 = vlaneseq
    %v137 = vshrl.u32 %v136, 7
    %v138 = vsub.s32 2, %v137
    %v139 = vrot.slane %v126, %v138
    %v140 = vlaneseq
    %v141 = vshrl.u32 %v140, 7
    %v142 = vsub.s32 3, %v141
    %v143 = vrot.slane %v126, %v142
    %v152 = vunpack.c.l.b16 %v122
    %v153 = vunpack.c.h.b16 %v122
    %v154 = vunpack.c.l.b16 %v123
    %v155 = vunpack.c.h.b16 %v123
    %v156 = vunpack.c.l.b16 %v124
    %v157 = vunpack.c.h.b16 %v124
    %v158 = vunpack.c.l.b16 %v125
    %v159 = vunpack.c.h.b16 %v125
    %v160 = vpack.c.b16 %v156, %v152
    %v161 = vpack.c.b16 %v157, %v153
    %v162 = vpack.c.b16 %v158, %v154
    %v163 = vpack.c.b16 %v159, %v155
    %vm168 = vcmask 130048
    %v170 = vsel %vm168, %v121, 0
    %172 = vmatprep.subr.bf16.mxu0 %v161
    %173 = vmatpush1.bf16.msra.mxu0 %v160
    %174 = vmatprep.subr.bf16.mxu0 0
    %175 = vmatpush1.bf16.msra.mxu0 0
    %176 = vmatprep.subr.bf16.mxu0 0
    %177 = vmatpush1.bf16.msra.mxu0 0
    %178 = vmatprep.subr.bf16.mxu0 0
    %179 = vmatpush1.bf16.msra.mxu0 0
    %180 = vmatprep.subr.bf16.mxu0 0
    %181 = vmatpush1.bf16.msra.mxu0 0
    %182 = vmatprep.subr.bf16.mxu0 0
    %183 = vmatpush1.bf16.msra.mxu0 0
    %184 = vmatprep.subr.bf16.mxu0 0
    %185 = vmatpush1.bf16.msra.mxu0 0
    %186 = vmatprep.subr.bf16.mxu0 0
    %187 = vmatpush1.bf16.msra.mxu0 0
    %188 = vmatprep.subr.bf16.mxu0 0
    %189 = vmatpush1.bf16.msra.mxu0 0
    %190 = vmatprep.subr.bf16.mxu0 0
    %191 = vmatpush1.bf16.msra.mxu0 0
    %192 = vmatprep.subr.bf16.mxu0 0
    %193 = vmatpush1.bf16.msra.mxu0 0
    %194 = vmatprep.subr.bf16.mxu0 0
    %195 = vmatpush1.bf16.msra.mxu0 0
    %196 = vmatprep.subr.bf16.mxu0 0
    %197 = vmatpush1.bf16.msra.mxu0 0
    %198 = vmatprep.subr.bf16.mxu0 0
    %199 = vmatpush1.bf16.msra.mxu0 0
    %200 = vmatprep.subr.bf16.mxu0 0
    %201 = vmatpush1.bf16.msra.mxu0 0
    %202 = vmatprep.subr.bf16.mxu0 0
    %203 = vmatpush1.bf16.msra.mxu0 0
    %204 = vmatprep.mubr.bf16.mxu0 0
    %205 = vmatmul.mubr.bf16.gmra.mrb[0].mxu0 %v170
    %v206 = vpop.f32.mrb[0].mxu0
    %v207 = vadd.f32 %v131, %v206
    %v208 = vpop.f32.mrb[0].mxu0
    %v209 = vadd.f32 %v135, %v208
    %v210 = vpop.f32.mrb[0].mxu0
    %v211 = vpop.f32.mrb[0].mxu0
    %212 = vdwg.mxu0
    %213 = vmatprep.subr.bf16.mxu0 %v163
    %214 = vmatpush1.bf16.msra.mxu0 %v162
    %215 = vmatprep.subr.bf16.mxu0 0
    %216 = vmatpush1.bf16.msra.mxu0 0
    %217 = vmatprep.subr.bf16.mxu0 0
    %218 = vmatpush1.bf16.msra.mxu0 0
    %219 = vmatprep.subr.bf16.mxu0 0
    %220 = vmatpush1.bf16.msra.mxu0 0
    %221 = vmatprep.subr.bf16.mxu0 0
    %222 = vmatpush1.bf16.msra.mxu0 0
    %223 = vmatprep.subr.bf16.mxu0 0
    %224 = vmatpush1.bf16.msra.mxu0 0
    %225 = vmatprep.subr.bf16.mxu0 0
    %226 = vmatpush1.bf16.msra.mxu0 0
    %227 = vmatprep.subr.bf16.mxu0 0
    %228 = vmatpush1.bf16.msra.mxu0 0
    %229 = vmatprep.subr.bf16.mxu0 0
    %230 = vmatpush1.bf16.msra.mxu0 0
    %231 = vmatprep.subr.bf16.mxu0 0
    %232 = vmatpush1.bf16.msra.mxu0 0
    %233 = vmatprep.subr.bf16.mxu0 0
    %234 = vmatpush1.bf16.msra.mxu0 0
    %235 = vmatprep.subr.bf16.mxu0 0
    %236 = vmatpush1.bf16.msra.mxu0 0
    %237 = vmatprep.subr.bf16.mxu0 0
    %238 = vmatpush1.bf16.msra.mxu0 0
    %239 = vmatprep.subr.bf16.mxu0 0
    %240 = vmatpush1.bf16.msra.mxu0 0
    %241 = vmatprep.subr.bf16.mxu0 0
    %242 = vmatpush1.bf16.msra.mxu0 0
    %243 = vmatprep.subr.bf16.mxu0 0
    %244 = vmatpush1.bf16.msra.mxu0 0
    %245 = vmatprep.mubr.bf16.mxu0 0
    %246 = vmatmul.mubr.bf16.gmra.mrb[0].mxu0 %v170
    %v247 = vpop.f32.mrb[0].mxu0
    %v248 = vadd.f32 %v139, %v247
    %v249 = vpop.f32.mrb[0].mxu0
    %v250 = vadd.f32 %v143, %v249
    %v251 = vpop.f32.mrb[0].mxu0
    %v252 = vpop.f32.mrb[0].mxu0
    %253 = vdwg.mxu0
    %v254 = vmax.f32 %v207, 0.0
    %v255 = vmax.f32 %v209, 0.0
    %v256 = vmax.f32 %v248, 0.0
    %v257 = vmax.f32 %v250, 0.0
    %v258 = vpack.c.bf16 %v254, %v254
    %v259 = vpack.c.bf16 %v255, %v255
    %v260 = vpack.c.bf16 %v256, %v256
    %v261 = vpack.c.bf16 %v257, %v257
    %v262 = vld [vmem:[#allocation9] sm:$0xff]
    %v263 = vld [vmem:[#allocation9 + $0x8] sm:$0xf]
    %v264 = vld [vmem:[#allocation9 + $0xc] sm:$0xff]
    %v265 = vld [vmem:[#allocation9 + $0x14] sm:$0xf]
    %v266 = vld [vmem:[#allocation9 + $0x18] sm:$0xff]
    %v267 = vld [vmem:[#allocation9 + $0x20] sm:$0xf]
    %v268 = vld [vmem:[#allocation9 + $0x24] sm:$0xff]
    %v269 = vld [vmem:[#allocation9 + $0x2c] sm:$0xf]
    %v270 = vld [vmem:[#allocation9 + $0x30] sm:$0xff]
    %v271 = vld [vmem:[#allocation9 + $0x38] sm:$0xf]
    %v272 = vld [vmem:[#allocation9 + $0x3c] sm:$0xff]
    %v273 = vld [vmem:[#allocation9 + $0x44] sm:$0xf]
    %v274 = vld [vmem:[#allocation9 + $0x48] sm:$0xff]
    %v275 = vld [vmem:[#allocation9 + $0x50] sm:$0xf]
    %v276 = vld [vmem:[#allocation9 + $0x54] sm:$0xff]
    %v277 = vld [vmem:[#allocation9 + $0x5c] sm:$0xf]
    %v278 = vld [vmem:[#allocation9 + $0x60] sm:$0xff]
    %v279 = vld [vmem:[#allocation9 + $0x68] sm:$0xf]
    %v280 = vld [vmem:[#allocation9 + $0x6c] sm:$0xff]
    %v281 = vld [vmem:[#allocation9 + $0x74] sm:$0xf]
    %v282 = vld [vmem:[#allocation9 + $0x78] sm:$0xff]
    %v283 = vld [vmem:[#allocation9 + $0x80] sm:$0xf]
    %v284 = vld [vmem:[#allocation9 + $0x84] sm:$0xff]
    %v285 = vld [vmem:[#allocation9 + $0x8c] sm:$0xf]
    %v286 = vld [vmem:[#allocation9 + $0x90] sm:$0xff]
    %v287 = vld [vmem:[#allocation9 + $0x98] sm:$0xf]
    %v288 = vld [vmem:[#allocation9 + $0x9c] sm:$0xff]
    %v289 = vld [vmem:[#allocation9 + $0xa4] sm:$0xf]
    %v290 = vld [vmem:[#allocation9 + $0xa8] sm:$0xff]
    %v291 = vld [vmem:[#allocation9 + $0xb0] sm:$0xf]
    %v292 = vld [vmem:[#allocation9 + $0xb4] sm:$0xff]
    %v293 = vld [vmem:[#allocation9 + $0xbc] sm:$0xf]
    %v294 = vld [vmem:[#allocation9 + $0xc0] sm:$0xff]
    %v295 = vld [vmem:[#allocation9 + $0xc8] sm:$0xf]
    %v296 = vld [vmem:[#allocation9 + $0xcc] sm:$0xff]
    %v297 = vld [vmem:[#allocation9 + $0xd4] sm:$0xf]
    %v298 = vld [vmem:[#allocation9 + $0xd8] sm:$0xff]
    %v299 = vld [vmem:[#allocation9 + $0xe0] sm:$0xf]
    %v300 = vld [vmem:[#allocation9 + $0xe4] sm:$0xff]
    %v301 = vld [vmem:[#allocation9 + $0xec] sm:$0xf]
    %v302 = vld [vmem:[#allocation9 + $0xf0] sm:$0xff]
    %v303 = vld [vmem:[#allocation9 + $0xf8] sm:$0xf]
    %v304 = vld [vmem:[#allocation9 + $0xfc] sm:$0xff]
    %v305 = vld [vmem:[#allocation9 + $0x104] sm:$0xf]
    %v306 = vld [vmem:[#allocation9 + $0x108] sm:$0xff]
    %v307 = vld [vmem:[#allocation9 + $0x110] sm:$0xf]
    %v308 = vld [vmem:[#allocation9 + $0x114] sm:$0xff]
    %v309 = vld [vmem:[#allocation9 + $0x11c] sm:$0xf]
    %v310 = vld [vmem:[#allocation9 + $0x120] sm:$0xff]
    %v311 = vld [vmem:[#allocation9 + $0x128] sm:$0xf]
    %v312 = vld [vmem:[#allocation9 + $0x12c] sm:$0xff]
    %v313 = vld [vmem:[#allocation9 + $0x134] sm:$0xf]
    %v314 = vld [vmem:[#allocation9 + $0x138] sm:$0xff]
    %v315 = vld [vmem:[#allocation9 + $0x140] sm:$0xf]
    %v316 = vld [vmem:[#allocation9 + $0x144] sm:$0xff]
    %v317 = vld [vmem:[#allocation9 + $0x14c] sm:$0xf]
    %v318 = vld [vmem:[#allocation9 + $0x150] sm:$0xff]
    %v319 = vld [vmem:[#allocation9 + $0x158] sm:$0xf]
    %v320 = vld [vmem:[#allocation9 + $0x15c] sm:$0xff]
    %v321 = vld [vmem:[#allocation9 + $0x164] sm:$0xf]
    %v322 = vld [vmem:[#allocation9 + $0x168] sm:$0xff]
    %v323 = vld [vmem:[#allocation9 + $0x170] sm:$0xf]
    %v324 = vld [vmem:[#allocation9 + $0x174] sm:$0xff]
    %v325 = vld [vmem:[#allocation9 + $0x17c] sm:$0xf]
    %v326 = vld [vmem:[#allocation9 + $0x180] sm:$0xff]
    %v327 = vld [vmem:[#allocation9 + $0x188] sm:$0xf]
    %v328 = vld [vmem:[#allocation9 + $0x18c] sm:$0xff]
    %v329 = vld [vmem:[#allocation9 + $0x194] sm:$0xf]
    %v330 = vld [vmem:[#allocation9 + $0x198] sm:$0xff]
    %v331 = vld [vmem:[#allocation9 + $0x1a0] sm:$0xf]
    %v332 = vld [vmem:[#allocation9 + $0x1a4] sm:$0xff]
    %v333 = vld [vmem:[#allocation9 + $0x1ac] sm:$0xf]
    %v334 = vld [vmem:[#allocation9 + $0x1b0] sm:$0xff]
    %v335 = vld [vmem:[#allocation9 + $0x1b8] sm:$0xf]
    %v336 = vld [vmem:[#allocation9 + $0x1bc] sm:$0xff]
    %v337 = vld [vmem:[#allocation9 + $0x1c4] sm:$0xf]
    %v338 = vld [vmem:[#allocation9 + $0x1c8] sm:$0xff]
    %v339 = vld [vmem:[#allocation9 + $0x1d0] sm:$0xf]
    %v340 = vld [vmem:[#allocation9 + $0x1d4] sm:$0xff]
    %v341 = vld [vmem:[#allocation9 + $0x1dc] sm:$0xf]
    %v342 = vld [vmem:[#allocation9 + $0x1e0] sm:$0xff]
    %v343 = vld [vmem:[#allocation9 + $0x1e8] sm:$0xf]
    %v344 = vld [vmem:[#allocation9 + $0x1ec] sm:$0xff]
    %v345 = vld [vmem:[#allocation9 + $0x1f4] sm:$0xf]
    %v346 = vld [vmem:[#allocation9 + $0x1f8] sm:$0xff]
    %v347 = vld [vmem:[#allocation9 + $0x200] sm:$0xf]
    %v348 = vld [vmem:[#allocation9 + $0x204] sm:$0xff]
    %v349 = vld [vmem:[#allocation9 + $0x20c] sm:$0xf]
    %v350 = vld [vmem:[#allocation9 + $0x210] sm:$0xff]
    %v351 = vld [vmem:[#allocation9 + $0x218] sm:$0xf]
    %v352 = vld [vmem:[#allocation9 + $0x21c] sm:$0xff]
    %v353 = vld [vmem:[#allocation9 + $0x224] sm:$0xf]
    %v354 = vld [vmem:[#allocation9 + $0x228] sm:$0xff]
    %v355 = vld [vmem:[#allocation9 + $0x230] sm:$0xf]
    %v356 = vld [vmem:[#allocation9 + $0x234] sm:$0xff]
    %v357 = vld [vmem:[#allocation9 + $0x23c] sm:$0xf]
    %v358 = vld [vmem:[#allocation9 + $0x240] sm:$0xff]
    %v359 = vld [vmem:[#allocation9 + $0x248] sm:$0xf]
    %v360 = vld [vmem:[#allocation9 + $0x24c] sm:$0xff]
    %v361 = vld [vmem:[#allocation9 + $0x254] sm:$0xf]
    %v362 = vld [vmem:[#allocation9 + $0x258] sm:$0xff]
    %v363 = vld [vmem:[#allocation9 + $0x260] sm:$0xf]
    %v364 = vld [vmem:[#allocation9 + $0x264] sm:$0xff]
    %v365 = vld [vmem:[#allocation9 + $0x26c] sm:$0xf]
    %v366 = vld [vmem:[#allocation9 + $0x270] sm:$0xff]
    %v367 = vld [vmem:[#allocation9 + $0x278] sm:$0xf]
    %v368 = vld [vmem:[#allocation9 + $0x27c] sm:$0xff]
    %v369 = vld [vmem:[#allocation9 + $0x284] sm:$0xf]
    %v370 = vld [vmem:[#allocation9 + $0x288] sm:$0xff]
    %v371 = vld [vmem:[#allocation9 + $0x290] sm:$0xf]
    %v372 = vld [vmem:[#allocation9 + $0x294] sm:$0xff]
    %v373 = vld [vmem:[#allocation9 + $0x29c] sm:$0xf]
    %v374 = vld [vmem:[#allocation9 + $0x2a0] sm:$0xff]
    %v375 = vld [vmem:[#allocation9 + $0x2a8] sm:$0xf]
    %v376 = vld [vmem:[#allocation9 + $0x2ac] sm:$0xff]
    %v377 = vld [vmem:[#allocation9 + $0x2b4] sm:$0xf]
    %v378 = vld [vmem:[#allocation9 + $0x2b8] sm:$0xff]
    %v379 = vld [vmem:[#allocation9 + $0x2c0] sm:$0xf]
    %v380 = vld [vmem:[#allocation9 + $0x2c4] sm:$0xff]
    %v381 = vld [vmem:[#allocation9 + $0x2cc] sm:$0xf]
    %v382 = vld [vmem:[#allocation9 + $0x2d0] sm:$0xff]
    %v383 = vld [vmem:[#allocation9 + $0x2d8] sm:$0xf]
    %v384 = vld [vmem:[#allocation9 + $0x2dc] sm:$0xff]
    %v385 = vld [vmem:[#allocation9 + $0x2e4] sm:$0xf]
    %v386 = vld [vmem:[#allocation9 + $0x2e8] sm:$0xff]
    %v387 = vld [vmem:[#allocation9 + $0x2f0] sm:$0xf]
    %v388 = vld [vmem:[#allocation9 + $0x2f4] sm:$0xff]
    %v389 = vld [vmem:[#allocation9 + $0x2fc] sm:$0xf]
    %v390 = vld [vmem:[#allocation11] sm:$0x7]
    %v392 = vlaneseq
    %v393 = vshrl.u32 %v392, 7
    %v394 = vsub.s32 0, %v393
    %v395 = vrot.slane %v390, %v394
    %v396 = vlaneseq
    %v397 = vshrl.u32 %v396, 7
    %v398 = vsub.s32 1, %v397
    %v399 = vrot.slane %v390, %v398
    %v400 = vlaneseq
    %v401 = vshrl.u32 %v400, 7
    %v402 = vsub.s32 2, %v401
    %v403 = vrot.slane %v390, %v402
    %v535 = vunpack.c.l.b16 %v262
    %v536 = vunpack.c.h.b16 %v262
    %v537 = vunpack.c.l.b16 %v263
    %v538 = vunpack.c.l.b16 %v264
    %v539 = vunpack.c.h.b16 %v264
    %v540 = vunpack.c.l.b16 %v265
    %v541 = vunpack.c.l.b16 %v266
    %v542 = vunpack.c.h.b16 %v266
    %v543 = vunpack.c.l.b16 %v267
    %v544 = vunpack.c.l.b16 %v268
    %v545 = vunpack.c.h.b16 %v268
    %v546 = vunpack.c.l.b16 %v269
    %v547 = vunpack.c.l.b16 %v270
    %v548 = vunpack.c.h.b16 %v270
    %v549 = vunpack.c.l.b16 %v271
    %v550 = vunpack.c.l.b16 %v272
    %v551 = vunpack.c.h.b16 %v272
    %v552 = vunpack.c.l.b16 %v273
    %v553 = vunpack.c.l.b16 %v274
    %v554 = vunpack.c.h.b16 %v274
    %v555 = vunpack.c.l.b16 %v275
    %v556 = vunpack.c.l.b16 %v276
    %v557 = vunpack.c.h.b16 %v276
    %v558 = vunpack.c.l.b16 %v277
    %v559 = vunpack.c.l.b16 %v278
    %v560 = vunpack.c.h.b16 %v278
    %v561 = vunpack.c.l.b16 %v279
    %v562 = vunpack.c.l.b16 %v280
    %v563 = vunpack.c.h.b16 %v280
    %v564 = vunpack.c.l.b16 %v281
    %v565 = vunpack.c.l.b16 %v282
    %v566 = vunpack.c.h.b16 %v282
    %v567 = vunpack.c.l.b16 %v283
    %v568 = vunpack.c.l.b16 %v284
    %v569 = vunpack.c.h.b16 %v284
    %v570 = vunpack.c.l.b16 %v285
    %v571 = vunpack.c.l.b16 %v286
    %v572 = vunpack.c.h.b16 %v286
    %v573 = vunpack.c.l.b16 %v287
    %v574 = vunpack.c.l.b16 %v288
    %v575 = vunpack.c.h.b16 %v288
    %v576 = vunpack.c.l.b16 %v289
    %v577 = vunpack.c.l.b16 %v290
    %v578 = vunpack.c.h.b16 %v290
    %v579 = vunpack.c.l.b16 %v291
    %v580 = vunpack.c.l.b16 %v292
    %v581 = vunpack.c.h.b16 %v292
    %v582 = vunpack.c.l.b16 %v293
    %v583 = vunpack.c.l.b16 %v294
    %v584 = vunpack.c.h.b16 %v294
    %v585 = vunpack.c.l.b16 %v295
    %v586 = vunpack.c.l.b16 %v296
    %v587 = vunpack.c.h.b16 %v296
    %v588 = vunpack.c.l.b16 %v297
    %v589 = vunpack.c.l.b16 %v298
    %v590 = vunpack.c.h.b16 %v298
    %v591 = vunpack.c.l.b16 %v299
    %v592 = vunpack.c.l.b16 %v300
    %v593 = vunpack.c.h.b16 %v300
    %v594 = vunpack.c.l.b16 %v301
    %v595 = vunpack.c.l.b16 %v302
    %v596 = vunpack.c.h.b16 %v302
    %v597 = vunpack.c.l.b16 %v303
    %v598 = vunpack.c.l.b16 %v304
    %v599 = vunpack.c.h.b16 %v304
    %v600 = vunpack.c.l.b16 %v305
    %v601 = vunpack.c.l.b16 %v306
    %v602 = vunpack.c.h.b16 %v306
    %v603 = vunpack.c.l.b16 %v307
    %v604 = vunpack.c.l.b16 %v308
    %v605 = vunpack.c.h.b16 %v308
    %v606 = vunpack.c.l.b16 %v309
    %v607 = vunpack.c.l.b16 %v310
    %v608 = vunpack.c.h.b16 %v310
    %v609 = vunpack.c.l.b16 %v311
    %v610 = vunpack.c.l.b16 %v312
    %v611 = vunpack.c.h.b16 %v312
    %v612 = vunpack.c.l.b16 %v313
    %v613 = vunpack.c.l.b16 %v314
    %v614 = vunpack.c.h.b16 %v314
    %v615 = vunpack.c.l.b16 %v315
    %v616 = vunpack.c.l.b16 %v316
    %v617 = vunpack.c.h.b16 %v316
    %v618 = vunpack.c.l.b16 %v317
    %v619 = vunpack.c.l.b16 %v318
    %v620 = vunpack.c.h.b16 %v318
    %v621 = vunpack.c.l.b16 %v319
    %v622 = vunpack.c.l.b16 %v320
    %v623 = vunpack.c.h.b16 %v320
    %v624 = vunpack.c.l.b16 %v321
    %v625 = vunpack.c.l.b16 %v322
    %v626 = vunpack.c.h.b16 %v322
    %v627 = vunpack.c.l.b16 %v323
    %v628 = vunpack.c.l.b16 %v324
    %v629 = vunpack.c.h.b16 %v324
    %v630 = vunpack.c.l.b16 %v325
    %v631 = vunpack.c.l.b16 %v326
    %v632 = vunpack.c.h.b16 %v326
    %v633 = vunpack.c.l.b16 %v327
    %v634 = vunpack.c.l.b16 %v328
    %v635 = vunpack.c.h.b16 %v328
    %v636 = vunpack.c.l.b16 %v329
    %v637 = vunpack.c.l.b16 %v330
    %v638 = vunpack.c.h.b16 %v330
    %v639 = vunpack.c.l.b16 %v331
    %v640 = vunpack.c.l.b16 %v332
    %v641 = vunpack.c.h.b16 %v332
    %v642 = vunpack.c.l.b16 %v333
    %v643 = vunpack.c.l.b16 %v334
    %v644 = vunpack.c.h.b16 %v334
    %v645 = vunpack.c.l.b16 %v335
    %v646 = vunpack.c.l.b16 %v336
    %v647 = vunpack.c.h.b16 %v336
    %v648 = vunpack.c.l.b16 %v337
    %v649 = vunpack.c.l.b16 %v338
    %v650 = vunpack.c.h.b16 %v338
    %v651 = vunpack.c.l.b16 %v339
    %v652 = vunpack.c.l.b16 %v340
    %v653 = vunpack.c.h.b16 %v340
    %v654 = vunpack.c.l.b16 %v341
    %v655 = vunpack.c.l.b16 %v342
    %v656 = vunpack.c.h.b16 %v342
    %v657 = vunpack.c.l.b16 %v343
    %v658 = vunpack.c.l.b16 %v344
    %v659 = vunpack.c.h.b16 %v344
    %v660 = vunpack.c.l.b16 %v345
    %v661 = vunpack.c.l.b16 %v346
    %v662 = vunpack.c.h.b16 %v346
    %v663 = vunpack.c.l.b16 %v347
    %v664 = vunpack.c.l.b16 %v348
    %v665 = vunpack.c.h.b16 %v348
    %v666 = vunpack.c.l.b16 %v349
    %v667 = vunpack.c.l.b16 %v350
    %v668 = vunpack.c.h.b16 %v350
    %v669 = vunpack.c.l.b16 %v351
    %v670 = vunpack.c.l.b16 %v352
    %v671 = vunpack.c.h.b16 %v352
    %v672 = vunpack.c.l.b16 %v353
    %v673 = vunpack.c.l.b16 %v354
    %v674 = vunpack.c.h.b16 %v354
    %v675 = vunpack.c.l.b16 %v355
    %v676 = vunpack.c.l.b16 %v356
    %v677 = vunpack.c.h.b16 %v356
    %v678 = vunpack.c.l.b16 %v357
    %v679 = vunpack.c.l.b16 %v358
    %v680 = vunpack.c.h.b16 %v358
    %v681 = vunpack.c.l.b16 %v359
    %v682 = vunpack.c.l.b16 %v360
    %v683 = vunpack.c.h.b16 %v360
    %v684 = vunpack.c.l.b16 %v361
    %v685 = vunpack.c.l.b16 %v362
    %v686 = vunpack.c.h.b16 %v362
    %v687 = vunpack.c.l.b16 %v363
    %v688 = vunpack.c.l.b16 %v364
    %v689 = vunpack.c.h.b16 %v364
    %v690 = vunpack.c.l.b16 %v365
    %v691 = vunpack.c.l.b16 %v366
    %v692 = vunpack.c.h.b16 %v366
    %v693 = vunpack.c.l.b16 %v367
    %v694 = vunpack.c.l.b16 %v368
    %v695 = vunpack.c.h.b16 %v368
    %v696 = vunpack.c.l.b16 %v369
    %v697 = vunpack.c.l.b16 %v370
    %v698 = vunpack.c.h.b16 %v370
    %v699 = vunpack.c.l.b16 %v371
    %v700 = vunpack.c.l.b16 %v372
    %v701 = vunpack.c.h.b16 %v372
    %v702 = vunpack.c.l.b16 %v373
    %v703 = vunpack.c.l.b16 %v374
    %v704 = vunpack.c.h.b16 %v374
    %v705 = vunpack.c.l.b16 %v375
    %v706 = vunpack.c.l.b16 %v376
    %v707 = vunpack.c.h.b16 %v376
    %v708 = vunpack.c.l.b16 %v377
    %v709 = vunpack.c.l.b16 %v378
    %v710 = vunpack.c.h.b16 %v378
    %v711 = vunpack.c.l.b16 %v379
    %v712 = vunpack.c.l.b16 %v380
    %v713 = vunpack.c.h.b16 %v380
    %v714 = vunpack.c.l.b16 %v381
    %v715 = vunpack.c.l.b16 %v382
    %v716 = vunpack.c.h.b16 %v382
    %v717 = vunpack.c.l.b16 %v383
    %v718 = vunpack.c.l.b16 %v384
    %v719 = vunpack.c.h.b16 %v384
    %v720 = vunpack.c.l.b16 %v385
    %v721 = vunpack.c.l.b16 %v386
    %v722 = vunpack.c.h.b16 %v386
    %v723 = vunpack.c.l.b16 %v387
    %v724 = vunpack.c.l.b16 %v388
    %v725 = vunpack.c.h.b16 %v388
    %v726 = vunpack.c.l.b16 %v389
    %v727 = vpack.c.b16 %v538, %v535
    %v728 = vpack.c.b16 %v539, %v536
    %v729 = vpack.c.b16 %v540, %v537
    %v730 = vpack.c.b16 %v544, %v541
    %v731 = vpack.c.b16 %v545, %v542
    %v732 = vpack.c.b16 %v546, %v543
    %v733 = vpack.c.b16 %v550, %v547
    %v734 = vpack.c.b16 %v551, %v548
    %v735 = vpack.c.b16 %v552, %v549
    %v736 = vpack.c.b16 %v556, %v553
    %v737 = vpack.c.b16 %v557, %v554
    %v738 = vpack.c.b16 %v558, %v555
    %v739 = vpack.c.b16 %v562, %v559
    %v740 = vpack.c.b16 %v563, %v560
    %v741 = vpack.c.b16 %v564, %v561
    %v742 = vpack.c.b16 %v568, %v565
    %v743 = vpack.c.b16 %v569, %v566
    %v744 = vpack.c.b16 %v570, %v567
    %v745 = vpack.c.b16 %v574, %v571
    %v746 = vpack.c.b16 %v575, %v572
    %v747 = vpack.c.b16 %v576, %v573
    %v748 = vpack.c.b16 %v580, %v577
    %v749 = vpack.c.b16 %v581, %v578
    %v750 = vpack.c.b16 %v582, %v579
    %v751 = vpack.c.b16 %v586, %v583
    %v752 = vpack.c.b16 %v587, %v584
    %v753 = vpack.c.b16 %v588, %v585
    %v754 = vpack.c.b16 %v592, %v589
    %v755 = vpack.c.b16 %v593, %v590
    %v756 = vpack.c.b16 %v594, %v591
    %v757 = vpack.c.b16 %v598, %v595
    %v758 = vpack.c.b16 %v599, %v596
    %v759 = vpack.c.b16 %v600, %v597
    %v760 = vpack.c.b16 %v604, %v601
    %v761 = vpack.c.b16 %v605, %v602
    %v762 = vpack.c.b16 %v606, %v603
    %v763 = vpack.c.b16 %v610, %v607
    %v764 = vpack.c.b16 %v611, %v608
    %v765 = vpack.c.b16 %v612, %v609
    %v766 = vpack.c.b16 %v616, %v613
    %v767 = vpack.c.b16 %v617, %v614
    %v768 = vpack.c.b16 %v618, %v615
    %v769 = vpack.c.b16 %v622, %v619
    %v770 = vpack.c.b16 %v623, %v620
    %v771 = vpack.c.b16 %v624, %v621
    %v772 = vpack.c.b16 %v628, %v625
    %v773 = vpack.c.b16 %v629, %v626
    %v774 = vpack.c.b16 %v630, %v627
    %v775 = vpack.c.b16 %v634, %v631
    %v776 = vpack.c.b16 %v635, %v632
    %v777 = vpack.c.b16 %v636, %v633
    %v778 = vpack.c.b16 %v640, %v637
    %v779 = vpack.c.b16 %v641, %v638
    %v780 = vpack.c.b16 %v642, %v639
    %v781 = vpack.c.b16 %v646, %v643
    %v782 = vpack.c.b16 %v647, %v644
    %v783 = vpack.c.b16 %v648, %v645
    %v784 = vpack.c.b16 %v652, %v649
    %v785 = vpack.c.b16 %v653, %v650
    %v786 = vpack.c.b16 %v654, %v651
    %v787 = vpack.c.b16 %v658, %v655
    %v788 = vpack.c.b16 %v659, %v656
    %v789 = vpack.c.b16 %v660, %v657
    %v790 = vpack.c.b16 %v664, %v661
    %v791 = vpack.c.b16 %v665, %v662
    %v792 = vpack.c.b16 %v666, %v663
    %v793 = vpack.c.b16 %v670, %v667
    %v794 = vpack.c.b16 %v671, %v668
    %v795 = vpack.c.b16 %v672, %v669
    %v796 = vpack.c.b16 %v676, %v673
    %v797 = vpack.c.b16 %v677, %v674
    %v798 = vpack.c.b16 %v678, %v675
    %v799 = vpack.c.b16 %v682, %v679
    %v800 = vpack.c.b16 %v683, %v680
    %v801 = vpack.c.b16 %v684, %v681
    %v802 = vpack.c.b16 %v688, %v685
    %v803 = vpack.c.b16 %v689, %v686
    %v804 = vpack.c.b16 %v690, %v687
    %v805 = vpack.c.b16 %v694, %v691
    %v806 = vpack.c.b16 %v695, %v692
    %v807 = vpack.c.b16 %v696, %v693
    %v808 = vpack.c.b16 %v700, %v697
    %v809 = vpack.c.b16 %v701, %v698
    %v810 = vpack.c.b16 %v702, %v699
    %v811 = vpack.c.b16 %v706, %v703
    %v812 = vpack.c.b16 %v707, %v704
    %v813 = vpack.c.b16 %v708, %v705
    %v814 = vpack.c.b16 %v712, %v709
    %v815 = vpack.c.b16 %v713, %v710
    %v816 = vpack.c.b16 %v714, %v711
    %v817 = vpack.c.b16 %v718, %v715
    %v818 = vpack.c.b16 %v719, %v716
    %v819 = vpack.c.b16 %v720, %v717
    %v820 = vpack.c.b16 %v724, %v721
    %v821 = vpack.c.b16 %v725, %v722
    %v822 = vpack.c.b16 %v726, %v723
    %919 = vmatprep.subr.bf16.mxu0 %v728
    %920 = vmatpush1.bf16.msra.mxu0 %v727
    %921 = vmatprep.subr.bf16.mxu0 %v731
    %922 = vmatpush1.bf16.msra.mxu0 %v730
    %923 = vmatprep.subr.bf16.mxu0 %v734
    %924 = vmatpush1.bf16.msra.mxu0 %v733
    %925 = vmatprep.subr.bf16.mxu0 %v737
    %926 = vmatpush1.bf16.msra.mxu0 %v736
    %927 = vmatprep.subr.bf16.mxu0 %v740
    %928 = vmatpush1.bf16.msra.mxu0 %v739
    %929 = vmatprep.subr.bf16.mxu0 %v743
    %930 = vmatpush1.bf16.msra.mxu0 %v742
    %931 = vmatprep.subr.bf16.mxu0 %v746
    %932 = vmatpush1.bf16.msra.mxu0 %v745
    %933 = vmatprep.subr.bf16.mxu0 %v749
    %934 = vmatpush1.bf16.msra.mxu0 %v748
    %935 = vmatprep.subr.bf16.mxu0 %v752
    %936 = vmatpush1.bf16.msra.mxu0 %v751
    %937 = vmatprep.subr.bf16.mxu0 %v755
    %938 = vmatpush1.bf16.msra.mxu0 %v754
    %939 = vmatprep.subr.bf16.mxu0 %v758
    %940 = vmatpush1.bf16.msra.mxu0 %v757
    %941 = vmatprep.subr.bf16.mxu0 %v761
    %942 = vmatpush1.bf16.msra.mxu0 %v760
    %943 = vmatprep.subr.bf16.mxu0 %v764
    %944 = vmatpush1.bf16.msra.mxu0 %v763
    %945 = vmatprep.subr.bf16.mxu0 %v767
    %946 = vmatpush1.bf16.msra.mxu0 %v766
    %947 = vmatprep.subr.bf16.mxu0 %v770
    %948 = vmatpush1.bf16.msra.mxu0 %v769
    %949 = vmatprep.subr.bf16.mxu0 %v773
    %950 = vmatpush1.bf16.msra.mxu0 %v772
    %951 = vmatprep.mubr.bf16.mxu0 %v259
    %952 = vmatmul.mubr.bf16.gmra.mrb[0].mxu0 %v258
    %v953 = vpop.f32.mrb[0].mxu0
    %v954 = vadd.f32 %v395, %v953
    %v955 = vpop.f32.mrb[0].mxu0
    %v956 = vadd.f32 %v399, %v955
    %v957 = vpop.f32.mrb[0].mxu0
    %v958 = vpop.f32.mrb[0].mxu0
    %959 = vdwg.mxu0
    %960 = vmatprep.subr.bf16.mxu0 %v776
    %961 = vmatpush1.bf16.msra.mxu0 %v775
    %962 = vmatprep.subr.bf16.mxu0 %v779
    %963 = vmatpush1.bf16.msra.mxu0 %v778
    %964 = vmatprep.subr.bf16.mxu0 %v782
    %965 = vmatpush1.bf16.msra.mxu0 %v781
    %966 = vmatprep.subr.bf16.mxu0 %v785
    %967 = vmatpush1.bf16.msra.mxu0 %v784
    %968 = vmatprep.subr.bf16.mxu0 %v788
    %969 = vmatpush1.bf16.msra.mxu0 %v787
    %970 = vmatprep.subr.bf16.mxu0 %v791
    %971 = vmatpush1.bf16.msra.mxu0 %v790
    %972 = vmatprep.subr.bf16.mxu0 %v794
    %973 = vmatpush1.bf16.msra.mxu0 %v793
    %974 = vmatprep.subr.bf16.mxu0 %v797
    %975 = vmatpush1.bf16.msra.mxu0 %v796
    %976 = vmatprep.subr.bf16.mxu0 %v800
    %977 = vmatpush1.bf16.msra.mxu0 %v799
    %978 = vmatprep.subr.bf16.mxu0 %v803
    %979 = vmatpush1.bf16.msra.mxu0 %v802
    %980 = vmatprep.subr.bf16.mxu0 %v806
    %981 = vmatpush1.bf16.msra.mxu0 %v805
    %982 = vmatprep.subr.bf16.mxu0 %v809
    %983 = vmatpush1.bf16.msra.mxu0 %v808
    %984 = vmatprep.subr.bf16.mxu0 %v812
    %985 = vmatpush1.bf16.msra.mxu0 %v811
    %986 = vmatprep.subr.bf16.mxu0 %v815
    %987 = vmatpush1.bf16.msra.mxu0 %v814
    %988 = vmatprep.subr.bf16.mxu0 %v818
    %989 = vmatpush1.bf16.msra.mxu0 %v817
    %990 = vmatprep.subr.bf16.mxu0 %v821
    %991 = vmatpush1.bf16.msra.mxu0 %v820
    %992 = vmatprep.mubr.bf16.mxu0 %v261
    %993 = vmatmul.mubr.bf16.gmra.mrb[0].mxu0 %v260
    %v994 = vpop.f32.mrb[0].mxu0
    %v995 = vadd.f32 %v954, %v994
    %v996 = vpop.f32.mrb[0].mxu0
    %v997 = vadd.f32 %v956, %v996
    %v998 = vpop.f32.mrb[0].mxu0
    %v999 = vpop.f32.mrb[0].mxu0
    %1000 = vdwg.mxu0
    %1001 = vmatprep.subr.bf16.mxu0 0
    %1002 = vmatpush1.bf16.msra.mxu0 %v729
    %1003 = vmatprep.subr.bf16.mxu0 0
    %1004 = vmatpush1.bf16.msra.mxu0 %v732
    %1005 = vmatprep.subr.bf16.mxu0 0
    %1006 = vmatpush1.bf16.msra.mxu0 %v735
    %1007 = vmatprep.subr.bf16.mxu0 0
    %1008 = vmatpush1.bf16.msra.mxu0 %v738
    %1009 = vmatprep.subr.bf16.mxu0 0
    %1010 = vmatpush1.bf16.msra.mxu0 %v741
    %1011 = vmatprep.subr.bf16.mxu0 0
    %1012 = vmatpush1.bf16.msra.mxu0 %v744
    %1013 = vmatprep.subr.bf16.mxu0 0
    %1014 = vmatpush1.bf16.msra.mxu0 %v747
    %1015 = vmatprep.subr.bf16.mxu0 0
    %1016 = vmatpush1.bf16.msra.mxu0 %v750
    %1017 = vmatprep.subr.bf16.mxu0 0
    %1018 = vmatpush1.bf16.msra.mxu0 %v753
    %1019 = vmatprep.subr.bf16.mxu0 0
    %1020 = vmatpush1.bf16.msra.mxu0 %v756
    %1021 = vmatprep.subr.bf16.mxu0 0
    %1022 = vmatpush1.bf16.msra.mxu0 %v759
    %1023 = vmatprep.subr.bf16.mxu0 0
    %1024 = vmatpush1.bf16.msra.mxu0 %v762
    %1025 = vmatprep.subr.bf16.mxu0 0
    %1026 = vmatpush1.bf16.msra.mxu0 %v765
    %1027 = vmatprep.subr.bf16.mxu0 0
    %1028 = vmatpush1.bf16.msra.mxu0 %v768
    %1029 = vmatprep.subr.bf16.mxu0 0
    %1030 = vmatpush1.bf16.msra.mxu0 %v771
    %1031 = vmatprep.subr.bf16.mxu0 0
    %1032 = vmatpush1.bf16.msra.mxu0 %v774
    %1033 = vmatprep.mubr.bf16.mxu0 %v259
    %1034 = vmatmul.mubr.bf16.gmra.mrb[0].mxu0 %v258
    %v1035 = vpop.f32.mrb[0].mxu0
    %v1036 = vadd.f32 %v403, %v1035
    %v1037 = vpop.f32.mrb[0].mxu0
    %v1038 = vpop.f32.mrb[0].mxu0
    %v1039 = vpop.f32.mrb[0].mxu0
    %1040 = vdwg.mxu0
    %1041 = vmatprep.subr.bf16.mxu0 0
    %1042 = vmatpush1.bf16.msra.mxu0 %v777
    %1043 = vmatprep.subr.bf16.mxu0 0
    %1044 = vmatpush1.bf16.msra.mxu0 %v780
    %1045 = vmatprep.subr.bf16.mxu0 0
    %1046 = vmatpush1.bf16.msra.mxu0 %v783
    %1047 = vmatprep.subr.bf16.mxu0 0
    %1048 = vmatpush1.bf16.msra.mxu0 %v786
    %1049 = vmatprep.subr.bf16.mxu0 0
    %1050 = vmatpush1.bf16.msra.mxu0 %v789
    %1051 = vmatprep.subr.bf16.mxu0 0
    %1052 = vmatpush1.bf16.msra.mxu0 %v792
    %1053 = vmatprep.subr.bf16.mxu0 0
    %1054 = vmatpush1.bf16.msra.mxu0 %v795
    %1055 = vmatprep.subr.bf16.mxu0 0
    %1056 = vmatpush1.bf16.msra.mxu0 %v798
    %1057 = vmatprep.subr.bf16.mxu0 0
    %1058 = vmatpush1.bf16.msra.mxu0 %v801
    %1059 = vmatprep.subr.bf16.mxu0 0
    %1060 = vmatpush1.bf16.msra.mxu0 %v804
    %1061 = vmatprep.subr.bf16.mxu0 0
    %1062 = vmatpush1.bf16.msra.mxu0 %v807
    %1063 = vmatprep.subr.bf16.mxu0 0
    %1064 = vmatpush1.bf16.msra.mxu0 %v810
    %1065 = vmatprep.subr.bf16.mxu0 0
    %1066 = vmatpush1.bf16.msra.mxu0 %v813
    %1067 = vmatprep.subr.bf16.mxu0 0
    %1068 = vmatpush1.bf16.msra.mxu0 %v816
    %1069 = vmatprep.subr.bf16.mxu0 0
    %1070 = vmatpush1.bf16.msra.mxu0 %v819
    %1071 = vmatprep.subr.bf16.mxu0 0
    %1072 = vmatpush1.bf16.msra.mxu0 %v822
    %1073 = vmatprep.mubr.bf16.mxu0 %v261
    %1074 = vmatmul.mubr.bf16.gmra.mrb[0].mxu0 %v260
    %v1075 = vpop.f32.mrb[0].mxu0
    %v1076 = vadd.f32 %v1036, %v1075
    %v1077 = vpop.f32.mrb[0].mxu0
    %v1078 = vpop.f32.mrb[0].mxu0
    %v1079 = vpop.f32.mrb[0].mxu0
    %1080 = vdwg.mxu0
    %v1081 = vmax.f32 %v995, 0.0
    %v1082 = vmax.f32 %v997, 0.0
    %v1083 = vmax.f32 %v1076, 0.0
    %v1084 = vpack.c.bf16 %v1081, %v1081
    %v1085 = vpack.c.bf16 %v1082, %v1082
    %v1086 = vpack.c.bf16 %v1083, %v1083
    %v1087 = vld [vmem:[#allocation12] sm:$0xf]
    %v1088 = vld [vmem:[#allocation12 + $0x4] sm:$0xf]
    %v1089 = vld [vmem:[#allocation12 + $0x8] sm:$0xf]
    %v1090 = vld [vmem:[#allocation12 + $0xc] sm:$0xf]
    %v1091 = vld [vmem:[#allocation12 + $0x10] sm:$0xf]
    %v1092 = vld [vmem:[#allocation12 + $0x14] sm:$0xf]
    %v1093 = vld [vmem:[#allocation12 + $0x18] sm:$0xf]
    %v1094 = vld [vmem:[#allocation12 + $0x1c] sm:$0xf]
    %v1095 = vld [vmem:[#allocation12 + $0x20] sm:$0xf]
    %v1096 = vld [vmem:[#allocation12 + $0x24] sm:$0xf]
    %v1097 = vld [vmem:[#allocation12 + $0x28] sm:$0xf]
    %v1098 = vld [vmem:[#allocation12 + $0x2c] sm:$0xf]
    %v1099 = vld [vmem:[#allocation12 + $0x30] sm:$0xf]
    %v1100 = vld [vmem:[#allocation12 + $0x34] sm:$0xf]
    %v1101 = vld [vmem:[#allocation12 + $0x38] sm:$0xf]
    %v1102 = vld [vmem:[#allocation12 + $0x3c] sm:$0xf]
    %v1103 = vld [vmem:[#allocation12 + $0x40] sm:$0xf]
    %v1104 = vld [vmem:[#allocation12 + $0x44] sm:$0xf]
    %v1105 = vld [vmem:[#allocation12 + $0x48] sm:$0xf]
    %v1106 = vld [vmem:[#allocation12 + $0x4c] sm:$0xf]
    %v1107 = vld [vmem:[#allocation12 + $0x50] sm:$0xf]
    %v1108 = vld [vmem:[#allocation12 + $0x54] sm:$0xf]
    %v1109 = vld [vmem:[#allocation12 + $0x58] sm:$0xf]
    %v1110 = vld [vmem:[#allocation12 + $0x5c] sm:$0xf]
    %v1111 = vld [vmem:[#allocation12 + $0x60] sm:$0xf]
    %v1112 = vld [vmem:[#allocation12 + $0x64] sm:$0xf]
    %v1113 = vld [vmem:[#allocation12 + $0x68] sm:$0xf]
    %v1114 = vld [vmem:[#allocation12 + $0x6c] sm:$0xf]
    %v1115 = vld [vmem:[#allocation12 + $0x70] sm:$0xf]
    %v1116 = vld [vmem:[#allocation12 + $0x74] sm:$0xf]
    %v1117 = vld [vmem:[#allocation12 + $0x78] sm:$0xf]
    %v1118 = vld [vmem:[#allocation12 + $0x7c] sm:$0xf]
    %v1119 = vld [vmem:[#allocation12 + $0x80] sm:$0xf]
    %v1120 = vld [vmem:[#allocation12 + $0x84] sm:$0xf]
    %v1121 = vld [vmem:[#allocation12 + $0x88] sm:$0xf]
    %v1122 = vld [vmem:[#allocation12 + $0x8c] sm:$0xf]
    %v1123 = vld [vmem:[#allocation12 + $0x90] sm:$0xf]
    %v1124 = vld [vmem:[#allocation12 + $0x94] sm:$0xf]
    %v1125 = vld [vmem:[#allocation12 + $0x98] sm:$0xf]
    %v1126 = vld [vmem:[#allocation12 + $0x9c] sm:$0xf]
    %v1127 = vld [vmem:[#allocation12 + $0xa0] sm:$0xf]
    %v1128 = vld [vmem:[#allocation12 + $0xa4] sm:$0xf]
    %v1129 = vld [vmem:[#allocation12 + $0xa8] sm:$0xf]
    %v1130 = vld [vmem:[#allocation12 + $0xac] sm:$0xf]
    %v1131 = vld [vmem:[#allocation12 + $0xb0] sm:$0xf]
    %v1132 = vld [vmem:[#allocation12 + $0xb4] sm:$0xf]
    %v1133 = vld [vmem:[#allocation12 + $0xb8] sm:$0xf]
    %v1134 = vld [vmem:[#allocation12 + $0xbc] sm:$0xf]
    %v1135 = vld [vmem:[#allocation14] sm:$0x1]
    %v1137 = vlaneseq
    %v1138 = vshrl.u32 %v1137, 7
    %v1139 = vsub.s32 0, %v1138
    %v1140 = vrot.slane %v1135, %v1139
    %v1190 = vunpack.c.l.b16 %v1087
    %v1191 = vunpack.c.l.b16 %v1088
    %v1192 = vunpack.c.l.b16 %v1089
    %v1193 = vunpack.c.l.b16 %v1090
    %v1194 = vunpack.c.l.b16 %v1091
    %v1195 = vunpack.c.l.b16 %v1092
    %v1196 = vunpack.c.l.b16 %v1093
    %v1197 = vunpack.c.l.b16 %v1094
    %v1198 = vunpack.c.l.b16 %v1095
    %v1199 = vunpack.c.l.b16 %v1096
    %v1200 = vunpack.c.l.b16 %v1097
    %v1201 = vunpack.c.l.b16 %v1098
    %v1202 = vunpack.c.l.b16 %v1099
    %v1203 = vunpack.c.l.b16 %v1100
    %v1204 = vunpack.c.l.b16 %v1101
    %v1205 = vunpack.c.l.b16 %v1102
    %v1206 = vunpack.c.l.b16 %v1103
    %v1207 = vunpack.c.l.b16 %v1104
    %v1208 = vunpack.c.l.b16 %v1105
    %v1209 = vunpack.c.l.b16 %v1106
    %v1210 = vunpack.c.l.b16 %v1107
    %v1211 = vunpack.c.l.b16 %v1108
    %v1212 = vunpack.c.l.b16 %v1109
    %v1213 = vunpack.c.l.b16 %v1110
    %v1214 = vunpack.c.l.b16 %v1111
    %v1215 = vunpack.c.l.b16 %v1112
    %v1216 = vunpack.c.l.b16 %v1113
    %v1217 = vunpack.c.l.b16 %v1114
    %v1218 = vunpack.c.l.b16 %v1115
    %v1219 = vunpack.c.l.b16 %v1116
    %v1220 = vunpack.c.l.b16 %v1117
    %v1221 = vunpack.c.l.b16 %v1118
    %v1222 = vunpack.c.l.b16 %v1119
    %v1223 = vunpack.c.l.b16 %v1120
    %v1224 = vunpack.c.l.b16 %v1121
    %v1225 = vunpack.c.l.b16 %v1122
    %v1226 = vunpack.c.l.b16 %v1123
    %v1227 = vunpack.c.l.b16 %v1124
    %v1228 = vunpack.c.l.b16 %v1125
    %v1229 = vunpack.c.l.b16 %v1126
    %v1230 = vunpack.c.l.b16 %v1127
    %v1231 = vunpack.c.l.b16 %v1128
    %v1232 = vunpack.c.l.b16 %v1129
    %v1233 = vunpack.c.l.b16 %v1130
    %v1234 = vunpack.c.l.b16 %v1131
    %v1235 = vunpack.c.l.b16 %v1132
    %v1236 = vunpack.c.l.b16 %v1133
    %v1237 = vunpack.c.l.b16 %v1134
    %v1238 = vpack.c.b16 %v1191, %v1190
    %v1239 = vpack.c.b16 %v1193, %v1192
    %v1240 = vpack.c.b16 %v1195, %v1194
    %v1241 = vpack.c.b16 %v1197, %v1196
    %v1242 = vpack.c.b16 %v1199, %v1198
    %v1243 = vpack.c.b16 %v1201, %v1200
    %v1244 = vpack.c.b16 %v1203, %v1202
    %v1245 = vpack.c.b16 %v1205, %v1204
    %v1246 = vpack.c.b16 %v1207, %v1206
    %v1247 = vpack.c.b16 %v1209, %v1208
    %v1248 = vpack.c.b16 %v1211, %v1210
    %v1249 = vpack.c.b16 %v1213, %v1212
    %v1250 = vpack.c.b16 %v1215, %v1214
    %v1251 = vpack.c.b16 %v1217, %v1216
    %v1252 = vpack.c.b16 %v1219, %v1218
    %v1253 = vpack.c.b16 %v1221, %v1220
    %v1254 = vpack.c.b16 %v1223, %v1222
    %v1255 = vpack.c.b16 %v1225, %v1224
    %v1256 = vpack.c.b16 %v1227, %v1226
    %v1257 = vpack.c.b16 %v1229, %v1228
    %v1258 = vpack.c.b16 %v1231, %v1230
    %v1259 = vpack.c.b16 %v1233, %v1232
    %v1260 = vpack.c.b16 %v1235, %v1234
    %v1261 = vpack.c.b16 %v1237, %v1236
    %1286 = vmatprep.subr.bf16.mxu0 0
    %1287 = vmatpush1.bf16.msra.mxu0 %v1238
    %1288 = vmatprep.subr.bf16.mxu0 0
    %1289 = vmatpush1.bf16.msra.mxu0 %v1239
    %1290 = vmatprep.subr.bf16.mxu0 0
    %1291 = vmatpush1.bf16.msra.mxu0 %v1240
    %1292 = vmatprep.subr.bf16.mxu0 0
    %1293 = vmatpush1.bf16.msra.mxu0 %v1241
    %1294 = vmatprep.subr.bf16.mxu0 0
    %1295 = vmatpush1.bf16.msra.mxu0 %v1242
    %1296 = vmatprep.subr.bf16.mxu0 0
    %1297 = vmatpush1.bf16.msra.mxu0 %v1243
    %1298 = vmatprep.subr.bf16.mxu0 0
    %1299 = vmatpush1.bf16.msra.mxu0 %v1244
    %1300 = vmatprep.subr.bf16.mxu0 0
    %1301 = vmatpush1.bf16.msra.mxu0 %v1245
    %1302 = vmatprep.subr.bf16.mxu0 0
    %1303 = vmatpush1.bf16.msra.mxu0 %v1246
    %1304 = vmatprep.subr.bf16.mxu0 0
    %1305 = vmatpush1.bf16.msra.mxu0 %v1247
    %1306 = vmatprep.subr.bf16.mxu0 0
    %1307 = vmatpush1.bf16.msra.mxu0 %v1248
    %1308 = vmatprep.subr.bf16.mxu0 0
    %1309 = vmatpush1.bf16.msra.mxu0 %v1249
    %1310 = vmatprep.subr.bf16.mxu0 0
    %1311 = vmatpush1.bf16.msra.mxu0 %v1250
    %1312 = vmatprep.subr.bf16.mxu0 0
    %1313 = vmatpush1.bf16.msra.mxu0 %v1251
    %1314 = vmatprep.subr.bf16.mxu0 0
    %1315 = vmatpush1.bf16.msra.mxu0 %v1252
    %1316 = vmatprep.subr.bf16.mxu0 0
    %1317 = vmatpush1.bf16.msra.mxu0 %v1253
    %1318 = vmatprep.mubr.bf16.mxu0 %v1085
    %1319 = vmatmul.mubr.bf16.gmra.mrb[0].mxu0 %v1084
    %v1320 = vpop.f32.mrb[0].mxu0
    %v1321 = vadd.f32 %v1140, %v1320
    %v1322 = vpop.f32.mrb[0].mxu0
    %v1323 = vpop.f32.mrb[0].mxu0
    %v1324 = vpop.f32.mrb[0].mxu0
    %1325 = vdwg.mxu0
    %1326 = vmatprep.subr.bf16.mxu0 0
    %1327 = vmatpush1.bf16.msra.mxu0 %v1254
    %1328 = vmatprep.subr.bf16.mxu0 0
    %1329 = vmatpush1.bf16.msra.mxu0 %v1255
    %1330 = vmatprep.subr.bf16.mxu0 0
    %1331 = vmatpush1.bf16.msra.mxu0 %v1256
    %1332 = vmatprep.subr.bf16.mxu0 0
    %1333 = vmatpush1.bf16.msra.mxu0 %v1257
    %1334 = vmatprep.subr.bf16.mxu0 0
    %1335 = vmatpush1.bf16.msra.mxu0 %v1258
    %1336 = vmatprep.subr.bf16.mxu0 0
    %1337 = vmatpush1.bf16.msra.mxu0 %v1259
    %1338 = vmatprep.subr.bf16.mxu0 0
    %1339 = vmatpush1.bf16.msra.mxu0 %v1260
    %1340 = vmatprep.subr.bf16.mxu0 0
    %1341 = vmatpush1.bf16.msra.mxu0 %v1261
    %1342 = vmatprep.subr.bf16.mxu0 0
    %1343 = vmatpush1.bf16.msra.mxu0 0
    %1344 = vmatprep.subr.bf16.mxu0 0
    %1345 = vmatpush1.bf16.msra.mxu0 0
    %1346 = vmatprep.subr.bf16.mxu0 0
    %1347 = vmatpush1.bf16.msra.mxu0 0
    %1348 = vmatprep.subr.bf16.mxu0 0
    %1349 = vmatpush1.bf16.msra.mxu0 0
    %1350 = vmatprep.subr.bf16.mxu0 0
    %1351 = vmatpush1.bf16.msra.mxu0 0
    %1352 = vmatprep.subr.bf16.mxu0 0
    %1353 = vmatpush1.bf16.msra.mxu0 0
    %1354 = vmatprep.subr.bf16.mxu0 0
    %1355 = vmatpush1.bf16.msra.mxu0 0
    %1356 = vmatprep.subr.bf16.mxu0 0
    %1357 = vmatpush1.bf16.msra.mxu0 0
    %1358 = vmatprep.mubr.bf16.mxu0 0
    %1359 = vmatmul.mubr.bf16.gmra.mrb[0].mxu0 %v1086
    %v1360 = vpop.f32.mrb[0].mxu0
    %v1361 = vadd.f32 %v1321, %v1360
    %v1362 = vpop.f32.mrb[0].mxu0
    %v1363 = vpop.f32.mrb[0].mxu0
    %v1364 = vpop.f32.mrb[0].mxu0
    %1365 = vdwg.mxu0
    %v1366 = vtanh.pop %v1361
    %v1367 = vstv %s119
    %v1368 = vmul.f32 %v1367, %v1366
    %1369 = vst [vmem:[#allocation15] sm:$0xff] %v1368
    // Predicated region
    $region62: #{tpu_custom_call.1} parent=1 // pred_check
      _
    $region63: #{tpu_custom_call.1} parent=1 // pred_check_branch
      %1371 = sbr.rel (0) target = $region65
    $region64: #{tpu_custom_call.1} parent=1 // pred_region
      %s1373 = ssub.s32 128, 128
      %1374 = vsyncadd [#allocation5], %s1373
      %s1376 = sshll.u32 [#allocation15], 4
      %s1377 = int_to_ptr.vmem [resolvable:$true] %s1376
      %1379 = dma.vmem_to_hbm [thread:$0]  %s1377, 128, %s8, [#allocation5]
    $region65: #{tpu_custom_call.1} parent=1 // pred_fallthru
      _
    // Predicated region
    $region66: #{tpu_custom_call.1} parent=1 // pred_check
      _
    $region67: #{tpu_custom_call.1} parent=1 // pred_check_branch
      %1381 = sbr.rel (0) target = $region69
    $region68: #{tpu_custom_call.1} parent=1 // pred_region
      %1382 = dma.done [#allocation5], 128
    $region69: #{tpu_custom_call.1} parent=1 // pred_fallthru
      _
    %1383 = vsyncpa [#allocation4], 1
    %1384 = vsyncpa [#allocation7], 1
    %1385 = vsyncpa [#allocation10], 1
    %1386 = vsyncpa [#allocation13], 1
    %1387 = vsyncpa [#allocation5], 1

</llo_original>
